<compile_context>
chip_gen: v7x
topology: tpu7x:2x2x1
jax: 0.10.0
libtpu: 0.0.40
codegen_flags: <defaults>
</compile_context>

<pallas_src>
import math
import functools

import jax
import jax.numpy as jnp
from jax.experimental import pallas as pl
from jax.experimental.pallas import tpu as pltpu

EXPANSION = 4          # Bottleneck expansion
BN_EPS = 1e-5


# ----------------------------------------------------------------------------- Pallas kernels

def _mm_kernel(a_ref, b_ref, s_ref, c_ref, o_ref, acc_ref, *, relu):
    """O = act((A @ B) * scale + bias).  Grid = (M/tm, N/tn, K/tk), bf16 MXU, f32 acc."""
    k = pl.program_id(2)

    @pl.when(k == 0)
    def _():
        acc_ref[...] = jnp.zeros_like(acc_ref)

    acc_ref[...] += jnp.dot(a_ref[...], b_ref[...],
                            preferred_element_type=jnp.float32)

    @pl.when(k == pl.num_programs(2) - 1)
    def _():
        out = acc_ref[...] * s_ref[...] + c_ref[...]          # f32 epilogue
        if relu:
            out = jnp.maximum(out, 0.0)
        o_ref[...] = out.astype(o_ref.dtype)


def _mm_res_kernel(a_ref, b_ref, s_ref, c_ref, r_ref, o_ref, acc_ref, *, relu):
    """Same as _mm_kernel but with the residual add fused into the epilogue."""
    k = pl.program_id(2)

    @pl.when(k == 0)
    def _():
        acc_ref[...] = jnp.zeros_like(acc_ref)

    acc_ref[...] += jnp.dot(a_ref[...], b_ref[...],
                            preferred_element_type=jnp.float32)

    @pl.when(k == pl.num_programs(2) - 1)
    def _():
        out = (acc_ref[...] * s_ref[...] + c_ref[...]
               + r_ref[...].astype(jnp.float32))               # f32 epilogue
        if relu:
            out = jnp.maximum(out, 0.0)
        o_ref[...] = out.astype(o_ref.dtype)


# ----------------------------------------------------------------------------- tiling helpers

def _round_up(x, m):
    return (x + m - 1) // m * m


def _pick_tiles(M, K, N):
    """Adaptive tiles: tiny M (N*Ho*Wo) -> no padding to 128; fat K/N tiles."""
    # --- M: round to bf16 sublane packing (16); keep one block if small. ---
    Mp = _round_up(M, 16)
    if Mp <= 512:
        tm = Mp
    else:
        tm = 256
        Mp = _round_up(M, tm)

    # --- K: fold whole reduction when it fits; otherwise few fat steps. ---
    Kp = _round_up(K, 128)
    tk = Kp
    if Kp > 2048:
        for t in (2048, 1536, 1024, 768, 512, 384, 256, 128):
            if Kp % t == 0:
                tk = t
                break

    # --- N: large tiles, but keep >=2 blocks on the parallel axis when wide
    #        (v7x has 2 TensorCores per chip sharing the grid). ---
    Np = _round_up(N, 128)
    tn = Np
    if Np >= 256:
        for t in (512, 384, 256, 128):
            if t <= Np // 2 and Np % t == 0:
                tn = t
                break
    return tm, tk, tn, Mp, Kp, Np


# ----------------------------------------------------------------------------- Pallas wrapper

def matmul_scale_bias(a, b, scale, bias, *, relu, residual=None,
                      out_dtype=jnp.bfloat16):
    """a: (M, K), b: (K, N) bf16, scale/bias: (N,) f32, residual: (M, N) or None."""
    M, K = a.shape
    _, N = b.shape
    tm, tk, tn, Mp, Kp, Np = _pick_tiles(M, K, N)

    a_p = jnp.pad(a.astype(jnp.bfloat16), ((0, Mp - M), (0, Kp - K)))
    b_p = jnp.pad(b.astype(jnp.bfloat16), ((0, Kp - K), (0, Np - N)))
    s_p = jnp.pad(scale.astype(jnp.float32), (0, Np - N)).reshape(1, Np)
    c_p = jnp.pad(bias.astype(jnp.float32), (0, Np - N)).reshape(1, Np)

    in_specs = [
        pl.BlockSpec((tm, tk), lambda i, j, k: (i, k)),
        pl.BlockSpec((tk, tn), lambda i, j, k: (k, j)),
        pl.BlockSpec((1, tn), lambda i, j, k: (0, j)),
        pl.BlockSpec((1, tn), lambda i, j, k: (0, j)),
    ]
    args = [a_p, b_p, s_p, c_p]

    if residual is not None:
        r_p = jnp.pad(residual.astype(jnp.bfloat16), ((0, Mp - M), (0, Np - N)))
        in_specs.append(pl.BlockSpec((tm, tn), lambda i, j, k: (i, j)))
        args.append(r_p)
        kernel = functools.partial(_mm_res_kernel, relu=relu)
    else:
        kernel = functools.partial(_mm_kernel, relu=relu)

    grid = (Mp // tm, Np // tn, Kp // tk)
    out = pl.pallas_call(
        kernel,
        out_shape=jax.ShapeDtypeStruct((Mp, Np), out_dtype),
        grid_spec=pltpu.PrefetchScalarGridSpec(
            num_scalar_prefetch=0,
            grid=grid,
            in_specs=in_specs,
            out_specs=pl.BlockSpec((tm, tn), lambda i, j, k: (i, j)),
            scratch_shapes=[pltpu.VMEM((tm, tn), jnp.float32)],
        ),
        compiler_params=pltpu.CompilerParams(
            dimension_semantics=("parallel", "parallel", "arbitrary"),
            # Stays well under v7x's 64 MiB physical VMEM; above the 32 MiB default.
            vmem_limit_bytes=48 * 1024 * 1024),
    )(*args)
    return out[:M, :N]


# ----------------------------------------------------------------------------- conv / pool glue

def im2col(x, kh, kw, stride, padding, dilation):
    """NHWC -> (N*Ho*Wo, kh*kw*C) patch matrix (pure indexing, no compute)."""
    # TODO(synk): the kh*kw tap axis could be folded into the matmul reduction grid to
    #             avoid materializing the replicated patch matrix in HBM for 3x3/7x7.
    N, H, W, C = x.shape
    if kh == 1 and kw == 1 and stride == 1 and padding == 0:
        return x.reshape(N * H * W, C), (N, H, W)
    xp = jnp.pad(x, ((0, 0), (padding, padding), (padding, padding), (0, 0)))
    Hp, Wp = H + 2 * padding, W + 2 * padding
    Ho = (Hp - dilation * (kh - 1) - 1) // stride + 1
    Wo = (Wp - dilation * (kw - 1) - 1) // stride + 1
    cols = []
    for i in range(kh):
        for j in range(kw):
            cols.append(xp[:, i * dilation:i * dilation + stride * (Ho - 1) + 1:stride,
                            j * dilation:j * dilation + stride * (Wo - 1) + 1:stride, :])
    cols = jnp.stack(cols, axis=3)                       # (N, Ho, Wo, kh*kw, C)
    return cols.reshape(N * Ho * Wo, kh * kw * C), (N, Ho, Wo)


def conv_bn(x, p, *, relu, residual=None):
    """Conv2d(bias=False) + folded BatchNorm + optional fused residual/ReLU."""
    cols, (N, Ho, Wo) = im2col(x, p["kh"], p["kw"],
                               p["stride"], p["padding"], p["dilation"])
    cout = p["w"].shape[1]
    res2 = residual.reshape(-1, cout) if residual is not None else None
    out = matmul_scale_bias(cols, p["w"], p["scale"], p["bias"],
                            relu=relu, residual=res2)
    return out.reshape(N, Ho, Wo, cout)


def maxpool3x3_s2_p1(x):
    """Max pool k=3, s=2, p=1 on NHWC.  Pairwise VPU max over strided slices (no
    stacked 9x intermediate, no in-kernel cross-sublane reduce)."""
    N, H, W, C = x.shape
    k, s, pad = 3, 2, 1
    Ho = (H + 2 * pad - k) // s + 1
    Wo = (W + 2 * pad - k) // s + 1
    xp = jnp.pad(x, ((0, 0), (pad, pad), (pad, pad), (0, 0)),
                 constant_values=-jnp.inf)
    out = None
    for i in range(k):
        for j in range(k):
            sl = xp[:, i:i + s * (Ho - 1) + 1:s, j:j + s * (Wo - 1) + 1:s, :]
            out = sl if out is None else jnp.maximum(out, sl)
    return out


# ----------------------------------------------------------------------------- parameters

def make_conv_bn(key, cout, cin, kh, kw, stride, padding, dilation):
    """Build a conv+BN unit with the weight pre-folded to (kh*kw*Cin, Cout) bf16 and
    the BN already reduced to an f32 scale/bias pair (done once at build time)."""
    n = kh * kw * cout
    std = math.sqrt(2.0 / n)
    w = jax.random.normal(key, (cout, cin, kh, kw), jnp.float32) * std
    w_mat = jnp.transpose(w, (2, 3, 1, 0)).reshape(kh * kw * cin, cout)
    w_mat = w_mat.astype(jnp.bfloat16)
    gamma = jnp.ones((cout,), jnp.float32)
    beta = jnp.zeros((cout,), jnp.float32)
    mean = jnp.zeros((cout,), jnp.float32)
    var = jnp.ones((cout,), jnp.float32)
    scale = gamma / jnp.sqrt(var + BN_EPS)
    bias = beta - mean * scale
    return dict(w=w_mat, scale=scale, bias=bias, kh=kh, kw=kw,
                stride=stride, padding=padding, dilation=dilation)


def build_resnet_params(key, layers, used_layers):
    keys = iter(jax.random.split(key, 512))
    params = {}
    params["conv1"] = make_conv_bn(next(keys), 64, 3, 7, 7,
                                   stride=2, padding=0, dilation=1)
    state = {"inplanes": 64}

    def make_bottleneck(inplanes, planes, stride, downsample, dilation):
        # carsot/pysot Bottleneck padding/dilation rules.
        padding = 2 - stride
        if downsample is not None and dilation > 1:
            dilation = dilation // 2
            padding = dilation
        if dilation > 1:
            padding = dilation
        p = dict(downsample=downsample)
        p["conv1"] = make_conv_bn(next(keys), planes, inplanes, 1, 1, 1, 0, 1)
        p["conv2"] = make_conv_bn(next(keys), planes, planes, 3, 3,
                                  stride, padding, dilation)
        p["conv3"] = make_conv_bn(next(keys), planes * EXPANSION, planes, 1, 1, 1, 0, 1)
        return p

    def make_layer(planes, blocks, stride=1, dilation=1):
        inplanes = state["inplanes"]
        downsample = None
        if stride != 1 or inplanes != planes * EXPANSION:
            if stride == 1 and dilation == 1:
                downsample = make_conv_bn(next(keys), planes * EXPANSION, inplanes,
                                          1, 1, stride, 0, 1)
            else:
                if dilation > 1:
                    dd = dilation // 2
                    padding = dd
                else:
                    dd = 1
                    padding = 0
                downsample = make_conv_bn(next(keys), planes * EXPANSION, inplanes,
                                          3, 3, stride, padding, dd)
        blocks_p = [make_bottleneck(inplanes, planes, stride, downsample, dilation)]
        state["inplanes"] = planes * EXPANSION
        for _ in range(1, blocks):
            blocks_p.append(make_bottleneck(state["inplanes"], planes, 1, None, dilation))
        return blocks_p

    params["layer1"] = make_layer(64, layers[0])
    params["layer2"] = make_layer(128, layers[1], stride=2)
    params["layer3"] = make_layer(256, layers[2], stride=1, dilation=2) if 3 in used_layers else None
    params["layer4"] = make_layer(512, layers[3], stride=1, dilation=4) if 4 in used_layers else None
    return params


# ----------------------------------------------------------------------------- forward

def bottleneck_forward(p, x):
    out = conv_bn(x, p["conv1"], relu=True)
    out = conv_bn(out, p["conv2"], relu=True)
    if p["downsample"] is not None:
        residual = conv_bn(x, p["downsample"], relu=False)
    else:
        residual = x
    # Residual add + ReLU fused into the conv3 matmul epilogue (no extra kernel).
    return conv_bn(out, p["conv3"], relu=True, residual=residual)


def run_layer(layer_params, x):
    if layer_params is None:   # corresponds to `self.layerN = lambda x: x`
        return x
    for block_p in layer_params:
        x = bottleneck_forward(block_p, x)
    return x


def resnet_forward(params, x_nchw, used_layers):
    x = jnp.transpose(x_nchw, (0, 2, 3, 1)).astype(jnp.bfloat16)  # NCHW -> NHWC, bf16
    x_ = conv_bn(x, params["conv1"], relu=True)
    x = maxpool3x3_s2_p1(x_)
    p1 = run_layer(params["layer1"], x)
    p2 = run_layer(params["layer2"], p1)
    p3 = run_layer(params["layer3"], p2)
    p4 = run_layer(params["layer4"], p3)
    outs = [x_, p1, p2, p3, p4]
    outs = [jnp.transpose(outs[i].astype(jnp.float32), (0, 3, 1, 2))
            for i in used_layers]                                   # back to NCHW, f32
    if len(outs) == 1:
        return outs[0]
    return outs


# ----------------------------------------------------------------------------- main

if __name__ == "__main__":
    key = jax.random.PRNGKey(0)
    pkey, xkey = jax.random.split(key)

    layers = [1, 1, 1, 1]          # small synthetic config (ResNet50 would be [3, 4, 6, 3])
    used_layers = [2, 3, 4]        # return [p2, p3, p4], as in SiamRPN++ backbones

    params = build_resnet_params(pkey, layers, used_layers)
    x = jax.random.normal(xkey, (2, 3, 32, 32), jnp.float32)       # NCHW input

    outs = resnet_forward(params, x, used_layers)
    outs = jax.block_until_ready(outs)

    # Expected shapes: p2=(2,512,3,3), p3=(2,1024,3,3), p4=(2,2048,3,3)
    assert outs[0].shape == (2, 512, 3, 3)
    assert outs[1].shape == (2, 1024, 3, 3)
    assert outs[2].shape == (2, 2048, 3, 3)
    assert all(bool(jnp.all(jnp.isfinite(o))) for o in outs)
    print("KERNEL_OK")
</pallas_src>

<mosaic_0001>
module attributes {stable_mosaic.version = 11 : i64} {
  func.func @_mm_kernel(%arg0: i32, %arg1: i32, %arg2: i32, %arg3: memref<352x256xbf16, #tpu.memory_space<vmem>>, %arg4: memref<256x128xbf16, #tpu.memory_space<vmem>>, %arg5: memref<1x128xf32, #tpu.memory_space<vmem>>, %arg6: memref<1x128xf32, #tpu.memory_space<vmem>>, %arg7: memref<352x128xbf16, #tpu.memory_space<vmem>>, %arg8: memref<352x128xf32, #tpu.memory_space<vmem>>) attributes {dimension_semantics = [#tpu.dimension_semantics<parallel>, #tpu.dimension_semantics<parallel>, #tpu.dimension_semantics<arbitrary>], iteration_bounds = array<i64: 1, 1, 1>, scalar_prefetch = 0 : i64, scratch_operands = 1 : i64, tpu.core_type = #tpu.core_type<tc>, window_params = [{transform_indices = @transform_0, window_bounds = array<i64: 352, 256>}, {transform_indices = @transform_1, window_bounds = array<i64: 256, 128>}, {transform_indices = @transform_2, window_bounds = array<i64: 1, 128>}, {transform_indices = @transform_3, window_bounds = array<i64: 1, 128>}, {transform_indices = @transform_4, window_bounds = array<i64: 352, 128>}]} {
    %c0_i32 = arith.constant 0 : i32
    %0 = arith.cmpi eq, %arg2, %c0_i32 : i32
    %1 = arith.extui %0 : i1 to i32
    %c0_i32_0 = arith.constant 0 : i32
    %2 = arith.cmpi ne, %1, %c0_i32_0 : i32
    scf.if %2 {
      %cst_10 = arith.constant 0.000000e+00 : f32
      %12 = vector.broadcast %cst_10 : f32 to vector<352x128xf32>
      %c0_11 = arith.constant 0 : index
      %c0_12 = arith.constant 0 : index
      %13 = vector.load %arg8[%c0_11, %c0_12] : memref<352x128xf32, #tpu.memory_space<vmem>>, vector<352x128xf32>
      tpu.vector_store %arg8[%c0_11, %c0_12], %12 {strides = array<i32>} : memref<352x128xf32, #tpu.memory_space<vmem>>, vector<352x128xf32>,
    } else {
    }
    %c0 = arith.constant 0 : index
    %c0_1 = arith.constant 0 : index
    %3 = vector.load %arg8[%c0, %c0_1] : memref<352x128xf32, #tpu.memory_space<vmem>>, vector<352x128xf32>
    %c0_2 = arith.constant 0 : index
    %c0_3 = arith.constant 0 : index
    %4 = vector.load %arg3[%c0_2, %c0_3] : memref<352x256xbf16, #tpu.memory_space<vmem>>, vector<352x256xbf16>
    %c0_4 = arith.constant 0 : index
    %c0_5 = arith.constant 0 : index
    %5 = vector.load %arg4[%c0_4, %c0_5] : memref<256x128xbf16, #tpu.memory_space<vmem>>, vector<256x128xbf16>
    %cst = arith.constant dense<0.000000e+00> : vector<352x128xf32>
    %6 = tpu.matmul %4, %5, %cst {dimension_numbers = #tpu.dot_dimension_numbers<[1], [0], [0], [1], [0, 0, 1, 1], [], []>} : vector<352x256xbf16>, vector<256x128xbf16>, vector<352x128xf32> -> vector<352x128xf32>
    %7 = arith.addf %3, %6 : vector<352x128xf32>
    %c0_6 = arith.constant 0 : index
    %c0_7 = arith.constant 0 : index
    %8 = vector.load %arg8[%c0_6, %c0_7] : memref<352x128xf32, #tpu.memory_space<vmem>>, vector<352x128xf32>
    tpu.vector_store %arg8[%c0_6, %c0_7], %7 {strides = array<i32>} : memref<352x128xf32, #tpu.memory_space<vmem>>, vector<352x128xf32>,
    %c0_i32_8 = arith.constant 0 : i32
    %9 = arith.cmpi eq, %arg2, %c0_i32_8 : i32
    %10 = arith.extui %9 : i1 to i32
    %c0_i32_9 = arith.constant 0 : i32
    %11 = arith.cmpi ne, %10, %c0_i32_9 : i32
    scf.if %11 {
      %c0_10 = arith.constant 0 : index
      %c0_11 = arith.constant 0 : index
      %12 = vector.load %arg8[%c0_10, %c0_11] : memref<352x128xf32, #tpu.memory_space<vmem>>, vector<352x128xf32>
      %c0_12 = arith.constant 0 : index
      %c0_13 = arith.constant 0 : index
      %13 = vector.load %arg5[%c0_12, %c0_13] : memref<1x128xf32, #tpu.memory_space<vmem>>, vector<1x128xf32>
      %14 = vector.broadcast %13 : vector<1x128xf32> to vector<352x128xf32>
      %15 = arith.mulf %12, %14 : vector<352x128xf32>
      %c0_14 = arith.constant 0 : index
      %c0_15 = arith.constant 0 : index
      %16 = vector.load %arg6[%c0_14, %c0_15] : memref<1x128xf32, #tpu.memory_space<vmem>>, vector<1x128xf32>
      %17 = vector.broadcast %16 : vector<1x128xf32> to vector<352x128xf32>
      %18 = arith.addf %15, %17 : vector<352x128xf32>
      %cst_16 = arith.constant 0.000000e+00 : f32
      %19 = vector.broadcast %cst_16 : f32 to vector<352x128xf32>
      %20 = arith.maximumf %18, %19 : vector<352x128xf32>
      %21 = arith.truncf %20 : vector<352x128xf32> to vector<352x128xbf16>
      %c0_17 = arith.constant 0 : index
      %c0_18 = arith.constant 0 : index
      %22 = vector.load %arg7[%c0_17, %c0_18] : memref<352x128xbf16, #tpu.memory_space<vmem>>, vector<352x128xbf16>
      tpu.vector_store %arg7[%c0_17, %c0_18], %21 {strides = array<i32>} : memref<352x128xbf16, #tpu.memory_space<vmem>>, vector<352x128xbf16>,
    } else {
    }
    return
  }
  func.func @transform_0(%arg0: i32, %arg1: i32, %arg2: i32) -> (i32, i32) {
    %c0_i32 = arith.constant 0 : i32
    return %arg0, %arg2 : i32, i32
  }
  func.func @transform_1(%arg0: i32, %arg1: i32, %arg2: i32) -> (i32, i32) {
    %c0_i32 = arith.constant 0 : i32
    return %arg2, %arg1 : i32, i32
  }
  func.func @transform_2(%arg0: i32, %arg1: i32, %arg2: i32) -> (i32, i32) {
    %c0_i32 = arith.constant 0 : i32
    %c0_i32_0 = arith.constant 0 : i32
    return %c0_i32, %arg1 : i32, i32
  }
  func.func @transform_3(%arg0: i32, %arg1: i32, %arg2: i32) -> (i32, i32) {
    %c0_i32 = arith.constant 0 : i32
    %c0_i32_0 = arith.constant 0 : i32
    return %c0_i32, %arg1 : i32, i32
  }
  func.func @transform_4(%arg0: i32, %arg1: i32, %arg2: i32) -> (i32, i32) {
    %c0_i32 = arith.constant 0 : i32
    return %arg0, %arg1 : i32, i32
  }
}

</mosaic_0001>

<llo_original>
// kernel: tpu_custom_call.1
$region0: #{tpu_custom_call.1}
  #allocation0 [shape = 'u32[]', space=smem, size = 0x4, offset = 0x4, fixed_abs, tag = 'smem constant byte address 0x4 - core index']
  #allocation1 [shape = 'u32[144,128]{1,0:T(1,128)}', space=vmem, size = 0x12000, scoped, tag = 'internal scratch']
  #allocation2 [shape = 'f32[352,128]{1,0:T(8,128)}', space=vmem, size = 0x2c000, scoped, tag = 'scratch operand']
  %s0 = inlined_call_operand.hbm [shape: bf16[352,256], index: 0, kind: input, shape index: {}]
  %s1 = inlined_call_operand.hbm [shape: bf16[256,128], index: 1, kind: input, shape index: {}]
  %s2 = inlined_call_operand.vmem [shape: f32[1,128], index: 2, kind: input, shape index: {}]
  %s3 = inlined_call_operand.vmem [shape: f32[1,128], index: 3, kind: input, shape index: {}]
  %s4 = inlined_call_operand.hbm [shape: bf16[352,128], index: 4, kind: output, shape index: {}]
  %s5 = sld [smem:[#allocation0]]
  $region42: #{tpu_custom_call.1} parent=0
    _
  %s7 = ssub.s32 1, %s5
  %s8 = scalar_select 0, %s7, %s5
  $region1: #{tpu_custom_call.1} parent=0
    #allocation3 [shape = 'u8[180224]{0}', space=vmem, size = 0x2c000, scoped, tag = 'input window, operand 0, single buffered']
    #allocation4 [shape = 's32[1]{0}', space=sflag, size = 0x4, scoped, tag = 'scoped memory for tpu_custom_call.1']
    #allocation5 [shape = 's32[1]{0}', space=sflag, size = 0x4, scoped, tag = 'scoped memory for tpu_custom_call.1']
    #allocation6 [shape = 'u8[65536]{0}', space=vmem, size = 0x10000, scoped, tag = 'input window, operand 1, single buffered']
    #allocation7 [shape = 's32[1]{0}', space=sflag, size = 0x4, scoped, tag = 'scoped memory for tpu_custom_call.1']
    #allocation8 [shape = 'u8[90112]{0}', space=vmem, size = 0x16000, scoped, tag = 'output window, operand 0, single buffered']
    %9 = vsyncpa [#allocation4], 0
    %10 = vsyncpa [#allocation7], 0
    %11 = vsyncpa [#allocation5], 0
    // Predicated region
    $region2: #{tpu_custom_call.1} parent=1 // pred_check
      _
    $region3: #{tpu_custom_call.1} parent=1 // pred_check_branch
      %13 = sbr.rel (0) target = $region5
    $region4: #{tpu_custom_call.1} parent=1 // pred_region
      %s15 = ssub.s32 5632, 5632
      %16 = vsyncadd [#allocation4], %s15
      %s17 = sshll.u32 [#allocation3], 4
      %s18 = int_to_ptr.vmem [resolvable:$true] %s17
      %23 = dma.hbm_to_vmem [thread:$0]  %s0, 5632, %s18, [#allocation4], 128, 128, 8
    $region5: #{tpu_custom_call.1} parent=1 // pred_fallthru
      _
    // Predicated region
    $region6: #{tpu_custom_call.1} parent=1 // pred_check
      _
    $region7: #{tpu_custom_call.1} parent=1 // pred_check_branch
      %25 = sbr.rel (0) target = $region9
    $region8: #{tpu_custom_call.1} parent=1 // pred_region
      %s27 = ssub.s32 2048, 2048
      %28 = vsyncadd [#allocation7], %s27
      %s29 = sshll.u32 [#allocation6], 4
      %s30 = int_to_ptr.vmem [resolvable:$true] %s29
      %35 = dma.hbm_to_vmem [thread:$0]  %s1, 2048, %s30, [#allocation7], 64, 64, 4
    $region9: #{tpu_custom_call.1} parent=1 // pred_fallthru
      _
    // Predicated region
    $region10: #{tpu_custom_call.1} parent=1 // pred_check
      _
    $region11: #{tpu_custom_call.1} parent=1 // pred_check_branch
      %37 = sbr.rel (0) target = $region13
    $region12: #{tpu_custom_call.1} parent=1 // pred_region
      _
    $region13: #{tpu_custom_call.1} parent=1 // pred_fallthru
      _
    // Predicated region
    $region14: #{tpu_custom_call.1} parent=1 // pred_check
      _
    $region15: #{tpu_custom_call.1} parent=1 // pred_check_branch
      %39 = sbr.rel (0) target = $region17
    $region16: #{tpu_custom_call.1} parent=1 // pred_region
      _
    $region17: #{tpu_custom_call.1} parent=1 // pred_fallthru
      _
    // Predicated region
    $region18: #{tpu_custom_call.1} parent=1 // pred_check
      _
    $region19: #{tpu_custom_call.1} parent=1 // pred_check_branch
      %41 = sbr.rel (0) target = $region21
    $region20: #{tpu_custom_call.1} parent=1 // pred_region
      %42 = dma.done [#allocation4], 5632
    $region21: #{tpu_custom_call.1} parent=1 // pred_fallthru
      _
    // Predicated region
    $region22: #{tpu_custom_call.1} parent=1 // pred_check
      _
    $region23: #{tpu_custom_call.1} parent=1 // pred_check_branch
      %44 = sbr.rel (0) target = $region25
    $region24: #{tpu_custom_call.1} parent=1 // pred_region
      %45 = dma.done [#allocation7], 2048
    $region25: #{tpu_custom_call.1} parent=1 // pred_fallthru
      _
    %p47 = scmp.eq.s32.totalorder 0, 0
    // Predicated region
    $region26: #{tpu_custom_call.1} parent=1 // pred_check
      %p48 = pneg %p47
    $region27: #{tpu_custom_call.1} parent=1 // pred_check_branch
      %50 = sbr.rel (%p48) target = $region29
    $region28: #{tpu_custom_call.1} parent=1 // pred_region
      %51 = vst [vmem:[#allocation2] sm:$0xff] 0.0
      %52 = vst [vmem:[#allocation2 + $0x8] sm:$0xff] 0.0
      %53 = vst [vmem:[#allocation2 + $0x10] sm:$0xff] 0.0
      %54 = vst [vmem:[#allocation2 + $0x18] sm:$0xff] 0.0
      %55 = vst [vmem:[#allocation2 + $0x20] sm:$0xff] 0.0
      %56 = vst [vmem:[#allocation2 + $0x28] sm:$0xff] 0.0
      %57 = vst [vmem:[#allocation2 + $0x30] sm:$0xff] 0.0
      %58 = vst [vmem:[#allocation2 + $0x38] sm:$0xff] 0.0
      %59 = vst [vmem:[#allocation2 + $0x40] sm:$0xff] 0.0
      %60 = vst [vmem:[#allocation2 + $0x48] sm:$0xff] 0.0
      %61 = vst [vmem:[#allocation2 + $0x50] sm:$0xff] 0.0
      %62 = vst [vmem:[#allocation2 + $0x58] sm:$0xff] 0.0
      %63 = vst [vmem:[#allocation2 + $0x60] sm:$0xff] 0.0
      %64 = vst [vmem:[#allocation2 + $0x68] sm:$0xff] 0.0
      %65 = vst [vmem:[#allocation2 + $0x70] sm:$0xff] 0.0
      %66 = vst [vmem:[#allocation2 + $0x78] sm:$0xff] 0.0
      %67 = vst [vmem:[#allocation2 + $0x80] sm:$0xff] 0.0
      %68 = vst [vmem:[#allocation2 + $0x88] sm:$0xff] 0.0
      %69 = vst [vmem:[#allocation2 + $0x90] sm:$0xff] 0.0
      %70 = vst [vmem:[#allocation2 + $0x98] sm:$0xff] 0.0
      %71 = vst [vmem:[#allocation2 + $0xa0] sm:$0xff] 0.0
      %72 = vst [vmem:[#allocation2 + $0xa8] sm:$0xff] 0.0
      %73 = vst [vmem:[#allocation2 + $0xb0] sm:$0xff] 0.0
      %74 = vst [vmem:[#allocation2 + $0xb8] sm:$0xff] 0.0
      %75 = vst [vmem:[#allocation2 + $0xc0] sm:$0xff] 0.0
      %76 = vst [vmem:[#allocation2 + $0xc8] sm:$0xff] 0.0
      %77 = vst [vmem:[#allocation2 + $0xd0] sm:$0xff] 0.0
      %78 = vst [vmem:[#allocation2 + $0xd8] sm:$0xff] 0.0
      %79 = vst [vmem:[#allocation2 + $0xe0] sm:$0xff] 0.0
      %80 = vst [vmem:[#allocation2 + $0xe8] sm:$0xff] 0.0
      %81 = vst [vmem:[#allocation2 + $0xf0] sm:$0xff] 0.0
      %82 = vst [vmem:[#allocation2 + $0xf8] sm:$0xff] 0.0
      %83 = vst [vmem:[#allocation2 + $0x100] sm:$0xff] 0.0
      %84 = vst [vmem:[#allocation2 + $0x108] sm:$0xff] 0.0
      %85 = vst [vmem:[#allocation2 + $0x110] sm:$0xff] 0.0
      %86 = vst [vmem:[#allocation2 + $0x118] sm:$0xff] 0.0
      %87 = vst [vmem:[#allocation2 + $0x120] sm:$0xff] 0.0
      %88 = vst [vmem:[#allocation2 + $0x128] sm:$0xff] 0.0
      %89 = vst [vmem:[#allocation2 + $0x130] sm:$0xff] 0.0
      %90 = vst [vmem:[#allocation2 + $0x138] sm:$0xff] 0.0
      %91 = vst [vmem:[#allocation2 + $0x140] sm:$0xff] 0.0
      %92 = vst [vmem:[#allocation2 + $0x148] sm:$0xff] 0.0
      %93 = vst [vmem:[#allocation2 + $0x150] sm:$0xff] 0.0
      %94 = vst [vmem:[#allocation2 + $0x158] sm:$0xff] 0.0
    $region29: #{tpu_custom_call.1} parent=1 // pred_fallthru
      _
    %v95 = vld [vmem:[#allocation2] sm:$0xff]
    %v96 = vld [vmem:[#allocation2 + $0x8] sm:$0xff]
    %v97 = vld [vmem:[#allocation2 + $0x10] sm:$0xff]
    %v98 = vld [vmem:[#allocation2 + $0x18] sm:$0xff]
    %v99 = vld [vmem:[#allocation2 + $0x20] sm:$0xff]
    %v100 = vld [vmem:[#allocation2 + $0x28] sm:$0xff]
    %v101 = vld [vmem:[#allocation2 + $0x30] sm:$0xff]
    %v102 = vld [vmem:[#allocation2 + $0x38] sm:$0xff]
    %v103 = vld [vmem:[#allocation2 + $0x40] sm:$0xff]
    %v104 = vld [vmem:[#allocation2 + $0x48] sm:$0xff]
    %v105 = vld [vmem:[#allocation2 + $0x50] sm:$0xff]
    %v106 = vld [vmem:[#allocation2 + $0x58] sm:$0xff]
    %v107 = vld [vmem:[#allocation2 + $0x60] sm:$0xff]
    %v108 = vld [vmem:[#allocation2 + $0x68] sm:$0xff]
    %v109 = vld [vmem:[#allocation2 + $0x70] sm:$0xff]
    %v110 = vld [vmem:[#allocation2 + $0x78] sm:$0xff]
    %v111 = vld [vmem:[#allocation2 + $0x80] sm:$0xff]
    %v112 = vld [vmem:[#allocation2 + $0x88] sm:$0xff]
    %v113 = vld [vmem:[#allocation2 + $0x90] sm:$0xff]
    %v114 = vld [vmem:[#allocation2 + $0x98] sm:$0xff]
    %v115 = vld [vmem:[#allocation2 + $0xa0] sm:$0xff]
    %v116 = vld [vmem:[#allocation2 + $0xa8] sm:$0xff]
    %v117 = vld [vmem:[#allocation2 + $0xb0] sm:$0xff]
    %v118 = vld [vmem:[#allocation2 + $0xb8] sm:$0xff]
    %v119 = vld [vmem:[#allocation2 + $0xc0] sm:$0xff]
    %v120 = vld [vmem:[#allocation2 + $0xc8] sm:$0xff]
    %v121 = vld [vmem:[#allocation2 + $0xd0] sm:$0xff]
    %v122 = vld [vmem:[#allocation2 + $0xd8] sm:$0xff]
    %v123 = vld [vmem:[#allocation2 + $0xe0] sm:$0xff]
    %v124 = vld [vmem:[#allocation2 + $0xe8] sm:$0xff]
    %v125 = vld [vmem:[#allocation2 + $0xf0] sm:$0xff]
    %v126 = vld [vmem:[#allocation2 + $0xf8] sm:$0xff]
    %v127 = vld [vmem:[#allocation2 + $0x100] sm:$0xff]
    %v128 = vld [vmem:[#allocation2 + $0x108] sm:$0xff]
    %v129 = vld [vmem:[#allocation2 + $0x110] sm:$0xff]
    %v130 = vld [vmem:[#allocation2 + $0x118] sm:$0xff]
    %v131 = vld [vmem:[#allocation2 + $0x120] sm:$0xff]
    %v132 = vld [vmem:[#allocation2 + $0x128] sm:$0xff]
    %v133 = vld [vmem:[#allocation2 + $0x130] sm:$0xff]
    %v134 = vld [vmem:[#allocation2 + $0x138] sm:$0xff]
    %v135 = vld [vmem:[#allocation2 + $0x140] sm:$0xff]
    %v136 = vld [vmem:[#allocation2 + $0x148] sm:$0xff]
    %v137 = vld [vmem:[#allocation2 + $0x150] sm:$0xff]
    %v138 = vld [vmem:[#allocation2 + $0x158] sm:$0xff]
    %v139 = vld [vmem:[#allocation3] sm:$0xff]
    %v140 = vld [vmem:[#allocation3 + $0x8] sm:$0xff]
    %v141 = vld [vmem:[#allocation3 + $0x10] sm:$0xff]
    %v142 = vld [vmem:[#allocation3 + $0x18] sm:$0xff]
    %v143 = vld [vmem:[#allocation3 + $0x20] sm:$0xff]
    %v144 = vld [vmem:[#allocation3 + $0x28] sm:$0xff]
    %v145 = vld [vmem:[#allocation3 + $0x30] sm:$0xff]
    %v146 = vld [vmem:[#allocation3 + $0x38] sm:$0xff]
    %v147 = vld [vmem:[#allocation3 + $0x40] sm:$0xff]
    %v148 = vld [vmem:[#allocation3 + $0x48] sm:$0xff]
    %v149 = vld [vmem:[#allocation3 + $0x50] sm:$0xff]
    %v150 = vld [vmem:[#allocation3 + $0x58] sm:$0xff]
    %v151 = vld [vmem:[#allocation3 + $0x60] sm:$0xff]
    %v152 = vld [vmem:[#allocation3 + $0x68] sm:$0xff]
    %v153 = vld [vmem:[#allocation3 + $0x70] sm:$0xff]
    %v154 = vld [vmem:[#allocation3 + $0x78] sm:$0xff]
    %v155 = vld [vmem:[#allocation3 + $0x80] sm:$0xff]
    %v156 = vld [vmem:[#allocation3 + $0x88] sm:$0xff]
    %v157 = vld [vmem:[#allocation3 + $0x90] sm:$0xff]
    %v158 = vld [vmem:[#allocation3 + $0x98] sm:$0xff]
    %v159 = vld [vmem:[#allocation3 + $0xa0] sm:$0xff]
    %v160 = vld [vmem:[#allocation3 + $0xa8] sm:$0xff]
    %v161 = vld [vmem:[#allocation3 + $0xb0] sm:$0xff]
    %v162 = vld [vmem:[#allocation3 + $0xb8] sm:$0xff]
    %v163 = vld [vmem:[#allocation3 + $0xc0] sm:$0xff]
    %v164 = vld [vmem:[#allocation3 + $0xc8] sm:$0xff]
    %v165 = vld [vmem:[#allocation3 + $0xd0] sm:$0xff]
    %v166 = vld [vmem:[#allocation3 + $0xd8] sm:$0xff]
    %v167 = vld [vmem:[#allocation3 + $0xe0] sm:$0xff]
    %v168 = vld [vmem:[#allocation3 + $0xe8] sm:$0xff]
    %v169 = vld [vmem:[#allocation3 + $0xf0] sm:$0xff]
    %v170 = vld [vmem:[#allocation3 + $0xf8] sm:$0xff]
    %v171 = vld [vmem:[#allocation3 + $0x100] sm:$0xff]
    %v172 = vld [vmem:[#allocation3 + $0x108] sm:$0xff]
    %v173 = vld [vmem:[#allocation3 + $0x110] sm:$0xff]
    %v174 = vld [vmem:[#allocation3 + $0x118] sm:$0xff]
    %v175 = vld [vmem:[#allocation3 + $0x120] sm:$0xff]
    %v176 = vld [vmem:[#allocation3 + $0x128] sm:$0xff]
    %v177 = vld [vmem:[#allocation3 + $0x130] sm:$0xff]
    %v178 = vld [vmem:[#allocation3 + $0x138] sm:$0xff]
    %v179 = vld [vmem:[#allocation3 + $0x140] sm:$0xff]
    %v180 = vld [vmem:[#allocation3 + $0x148] sm:$0xff]
    %v181 = vld [vmem:[#allocation3 + $0x150] sm:$0xff]
    %v182 = vld [vmem:[#allocation3 + $0x158] sm:$0xff]
    %v183 = vld [vmem:[#allocation6] sm:$0xf]
    %v184 = vld [vmem:[#allocation6 + $0x4] sm:$0xf]
    %v185 = vld [vmem:[#allocation6 + $0x8] sm:$0xf]
    %v186 = vld [vmem:[#allocation6 + $0xc] sm:$0xf]
    %v187 = vld [vmem:[#allocation6 + $0x10] sm:$0xf]
    %v188 = vld [vmem:[#allocation6 + $0x14] sm:$0xf]
    %v189 = vld [vmem:[#allocation6 + $0x18] sm:$0xf]
    %v190 = vld [vmem:[#allocation6 + $0x1c] sm:$0xf]
    %v191 = vld [vmem:[#allocation6 + $0x20] sm:$0xf]
    %v192 = vld [vmem:[#allocation6 + $0x24] sm:$0xf]
    %v193 = vld [vmem:[#allocation6 + $0x28] sm:$0xf]
    %v194 = vld [vmem:[#allocation6 + $0x2c] sm:$0xf]
    %v195 = vld [vmem:[#allocation6 + $0x30] sm:$0xf]
    %v196 = vld [vmem:[#allocation6 + $0x34] sm:$0xf]
    %v197 = vld [vmem:[#allocation6 + $0x38] sm:$0xf]
    %v198 = vld [vmem:[#allocation6 + $0x3c] sm:$0xf]
    %v199 = vld [vmem:[#allocation6 + $0x40] sm:$0xf]
    %v200 = vld [vmem:[#allocation6 + $0x44] sm:$0xf]
    %v201 = vld [vmem:[#allocation6 + $0x48] sm:$0xf]
    %v202 = vld [vmem:[#allocation6 + $0x4c] sm:$0xf]
    %v203 = vld [vmem:[#allocation6 + $0x50] sm:$0xf]
    %v204 = vld [vmem:[#allocation6 + $0x54] sm:$0xf]
    %v205 = vld [vmem:[#allocation6 + $0x58] sm:$0xf]
    %v206 = vld [vmem:[#allocation6 + $0x5c] sm:$0xf]
    %v207 = vld [vmem:[#allocation6 + $0x60] sm:$0xf]
    %v208 = vld [vmem:[#allocation6 + $0x64] sm:$0xf]
    %v209 = vld [vmem:[#allocation6 + $0x68] sm:$0xf]
    %v210 = vld [vmem:[#allocation6 + $0x6c] sm:$0xf]
    %v211 = vld [vmem:[#allocation6 + $0x70] sm:$0xf]
    %v212 = vld [vmem:[#allocation6 + $0x74] sm:$0xf]
    %v213 = vld [vmem:[#allocation6 + $0x78] sm:$0xf]
    %v214 = vld [vmem:[#allocation6 + $0x7c] sm:$0xf]
    %v259 = vunpack.c.l.b16 %v139
    %v260 = vunpack.c.h.b16 %v139
    %v261 = vunpack.c.l.b16 %v140
    %v262 = vunpack.c.h.b16 %v140
    %v263 = vunpack.c.l.b16 %v141
    %v264 = vunpack.c.h.b16 %v141
    %v265 = vunpack.c.l.b16 %v142
    %v266 = vunpack.c.h.b16 %v142
    %v267 = vunpack.c.l.b16 %v143
    %v268 = vunpack.c.h.b16 %v143
    %v269 = vunpack.c.l.b16 %v144
    %v270 = vunpack.c.h.b16 %v144
    %v271 = vunpack.c.l.b16 %v145
    %v272 = vunpack.c.h.b16 %v145
    %v273 = vunpack.c.l.b16 %v146
    %v274 = vunpack.c.h.b16 %v146
    %v275 = vunpack.c.l.b16 %v147
    %v276 = vunpack.c.h.b16 %v147
    %v277 = vunpack.c.l.b16 %v148
    %v278 = vunpack.c.h.b16 %v148
    %v279 = vunpack.c.l.b16 %v149
    %v280 = vunpack.c.h.b16 %v149
    %v281 = vunpack.c.l.b16 %v150
    %v282 = vunpack.c.h.b16 %v150
    %v283 = vunpack.c.l.b16 %v151
    %v284 = vunpack.c.h.b16 %v151
    %v285 = vunpack.c.l.b16 %v152
    %v286 = vunpack.c.h.b16 %v152
    %v287 = vunpack.c.l.b16 %v153
    %v288 = vunpack.c.h.b16 %v153
    %v289 = vunpack.c.l.b16 %v154
    %v290 = vunpack.c.h.b16 %v154
    %v291 = vunpack.c.l.b16 %v155
    %v292 = vunpack.c.h.b16 %v155
    %v293 = vunpack.c.l.b16 %v156
    %v294 = vunpack.c.h.b16 %v156
    %v295 = vunpack.c.l.b16 %v157
    %v296 = vunpack.c.h.b16 %v157
    %v297 = vunpack.c.l.b16 %v158
    %v298 = vunpack.c.h.b16 %v158
    %v299 = vunpack.c.l.b16 %v159
    %v300 = vunpack.c.h.b16 %v159
    %v301 = vunpack.c.l.b16 %v160
    %v302 = vunpack.c.h.b16 %v160
    %v303 = vunpack.c.l.b16 %v161
    %v304 = vunpack.c.h.b16 %v161
    %v305 = vunpack.c.l.b16 %v162
    %v306 = vunpack.c.h.b16 %v162
    %v307 = vunpack.c.l.b16 %v163
    %v308 = vunpack.c.h.b16 %v163
    %v309 = vunpack.c.l.b16 %v164
    %v310 = vunpack.c.h.b16 %v164
    %v311 = vunpack.c.l.b16 %v165
    %v312 = vunpack.c.h.b16 %v165
    %v313 = vunpack.c.l.b16 %v166
    %v314 = vunpack.c.h.b16 %v166
    %v315 = vunpack.c.l.b16 %v167
    %v316 = vunpack.c.h.b16 %v167
    %v317 = vunpack.c.l.b16 %v168
    %v318 = vunpack.c.h.b16 %v168
    %v319 = vunpack.c.l.b16 %v169
    %v320 = vunpack.c.h.b16 %v169
    %v321 = vunpack.c.l.b16 %v170
    %v322 = vunpack.c.h.b16 %v170
    %v323 = vunpack.c.l.b16 %v171
    %v324 = vunpack.c.h.b16 %v171
    %v325 = vunpack.c.l.b16 %v172
    %v326 = vunpack.c.h.b16 %v172
    %v327 = vunpack.c.l.b16 %v173
    %v328 = vunpack.c.h.b16 %v173
    %v329 = vunpack.c.l.b16 %v174
    %v330 = vunpack.c.h.b16 %v174
    %v331 = vunpack.c.l.b16 %v175
    %v332 = vunpack.c.h.b16 %v175
    %v333 = vunpack.c.l.b16 %v176
    %v334 = vunpack.c.h.b16 %v176
    %v335 = vunpack.c.l.b16 %v177
    %v336 = vunpack.c.h.b16 %v177
    %v337 = vunpack.c.l.b16 %v178
    %v338 = vunpack.c.h.b16 %v178
    %v339 = vunpack.c.l.b16 %v179
    %v340 = vunpack.c.h.b16 %v179
    %v341 = vunpack.c.l.b16 %v180
    %v342 = vunpack.c.h.b16 %v180
    %v343 = vunpack.c.l.b16 %v181
    %v344 = vunpack.c.h.b16 %v181
    %v345 = vunpack.c.l.b16 %v182
    %v346 = vunpack.c.h.b16 %v182
    %v347 = vpack.c.b16 %v261, %v259
    %v348 = vpack.c.b16 %v262, %v260
    %v349 = vpack.c.b16 %v265, %v263
    %v350 = vpack.c.b16 %v266, %v264
    %v351 = vpack.c.b16 %v269, %v267
    %v352 = vpack.c.b16 %v270, %v268
    %v353 = vpack.c.b16 %v273, %v271
    %v354 = vpack.c.b16 %v274, %v272
    %v355 = vpack.c.b16 %v277, %v275
    %v356 = vpack.c.b16 %v278, %v276
    %v357 = vpack.c.b16 %v281, %v279
    %v358 = vpack.c.b16 %v282, %v280
    %v359 = vpack.c.b16 %v285, %v283
    %v360 = vpack.c.b16 %v286, %v284
    %v361 = vpack.c.b16 %v289, %v287
    %v362 = vpack.c.b16 %v290, %v288
    %v363 = vpack.c.b16 %v293, %v291
    %v364 = vpack.c.b16 %v294, %v292
    %v365 = vpack.c.b16 %v297, %v295
    %v366 = vpack.c.b16 %v298, %v296
    %v367 = vpack.c.b16 %v301, %v299
    %v368 = vpack.c.b16 %v302, %v300
    %v369 = vpack.c.b16 %v305, %v303
    %v370 = vpack.c.b16 %v306, %v304
    %v371 = vpack.c.b16 %v309, %v307
    %v372 = vpack.c.b16 %v310, %v308
    %v373 = vpack.c.b16 %v313, %v311
    %v374 = vpack.c.b16 %v314, %v312
    %v375 = vpack.c.b16 %v317, %v315
    %v376 = vpack.c.b16 %v318, %v316
    %v377 = vpack.c.b16 %v321, %v319
    %v378 = vpack.c.b16 %v322, %v320
    %v379 = vpack.c.b16 %v325, %v323
    %v380 = vpack.c.b16 %v326, %v324
    %v381 = vpack.c.b16 %v329, %v327
    %v382 = vpack.c.b16 %v330, %v328
    %v383 = vpack.c.b16 %v333, %v331
    %v384 = vpack.c.b16 %v334, %v332
    %v385 = vpack.c.b16 %v337, %v335
    %v386 = vpack.c.b16 %v338, %v336
    %v387 = vpack.c.b16 %v341, %v339
    %v388 = vpack.c.b16 %v342, %v340
    %v389 = vpack.c.b16 %v345, %v343
    %v390 = vpack.c.b16 %v346, %v344
    %v467 = vunpack.c.l.b16 %v183
    %v468 = vunpack.c.l.b16 %v184
    %v469 = vunpack.c.l.b16 %v185
    %v470 = vunpack.c.l.b16 %v186
    %v471 = vunpack.c.l.b16 %v187
    %v472 = vunpack.c.l.b16 %v188
    %v473 = vunpack.c.l.b16 %v189
    %v474 = vunpack.c.l.b16 %v190
    %v475 = vunpack.c.l.b16 %v191
    %v476 = vunpack.c.l.b16 %v192
    %v477 = vunpack.c.l.b16 %v193
    %v478 = vunpack.c.l.b16 %v194
    %v479 = vunpack.c.l.b16 %v195
    %v480 = vunpack.c.l.b16 %v196
    %v481 = vunpack.c.l.b16 %v197
    %v482 = vunpack.c.l.b16 %v198
    %v483 = vunpack.c.l.b16 %v199
    %v484 = vunpack.c.l.b16 %v200
    %v485 = vunpack.c.l.b16 %v201
    %v486 = vunpack.c.l.b16 %v202
    %v487 = vunpack.c.l.b16 %v203
    %v488 = vunpack.c.l.b16 %v204
    %v489 = vunpack.c.l.b16 %v205
    %v490 = vunpack.c.l.b16 %v206
    %v491 = vunpack.c.l.b16 %v207
    %v492 = vunpack.c.l.b16 %v208
    %v493 = vunpack.c.l.b16 %v209
    %v494 = vunpack.c.l.b16 %v210
    %v495 = vunpack.c.l.b16 %v211
    %v496 = vunpack.c.l.b16 %v212
    %v497 = vunpack.c.l.b16 %v213
    %v498 = vunpack.c.l.b16 %v214
    %v499 = vpack.c.b16 %v468, %v467
    %v500 = vpack.c.b16 %v470, %v469
    %v501 = vpack.c.b16 %v472, %v471
    %v502 = vpack.c.b16 %v474, %v473
    %v503 = vpack.c.b16 %v476, %v475
    %v504 = vpack.c.b16 %v478, %v477
    %v505 = vpack.c.b16 %v480, %v479
    %v506 = vpack.c.b16 %v482, %v481
    %v507 = vpack.c.b16 %v484, %v483
    %v508 = vpack.c.b16 %v486, %v485
    %v509 = vpack.c.b16 %v488, %v487
    %v510 = vpack.c.b16 %v490, %v489
    %v511 = vpack.c.b16 %v492, %v491
    %v512 = vpack.c.b16 %v494, %v493
    %v513 = vpack.c.b16 %v496, %v495
    %v514 = vpack.c.b16 %v498, %v497
    %531 = vmatprep.subr.bf16.mxu0 0
    %532 = vmatpush1.bf16.msra.mxu0 %v499
    %533 = vmatprep.subr.bf16.mxu0 0
    %534 = vmatpush1.bf16.msra.mxu0 %v500
    %535 = vmatprep.subr.bf16.mxu0 0
    %536 = vmatpush1.bf16.msra.mxu0 %v501
    %537 = vmatprep.subr.bf16.mxu0 0
    %538 = vmatpush1.bf16.msra.mxu0 %v502
    %539 = vmatprep.subr.bf16.mxu0 0
    %540 = vmatpush1.bf16.msra.mxu0 %v503
    %541 = vmatprep.subr.bf16.mxu0 0
    %542 = vmatpush1.bf16.msra.mxu0 %v504
    %543 = vmatprep.subr.bf16.mxu0 0
    %544 = vmatpush1.bf16.msra.mxu0 %v505
    %545 = vmatprep.subr.bf16.mxu0 0
    %546 = vmatpush1.bf16.msra.mxu0 %v506
    %547 = vmatprep.subr.bf16.mxu0 0
    %548 = vmatpush1.bf16.msra.mxu0 %v507
    %549 = vmatprep.subr.bf16.mxu0 0
    %550 = vmatpush1.bf16.msra.mxu0 %v508
    %551 = vmatprep.subr.bf16.mxu0 0
    %552 = vmatpush1.bf16.msra.mxu0 %v509
    %553 = vmatprep.subr.bf16.mxu0 0
    %554 = vmatpush1.bf16.msra.mxu0 %v510
    %555 = vmatprep.subr.bf16.mxu0 0
    %556 = vmatpush1.bf16.msra.mxu0 %v511
    %557 = vmatprep.subr.bf16.mxu0 0
    %558 = vmatpush1.bf16.msra.mxu0 %v512
    %559 = vmatprep.subr.bf16.mxu0 0
    %560 = vmatpush1.bf16.msra.mxu0 %v513
    %561 = vmatprep.subr.bf16.mxu0 0
    %562 = vmatpush1.bf16.msra.mxu0 %v514
    %563 = vmatprep.mubr.bf16.mxu0 %v348
    %564 = vmatmul.mubr.bf16.gmra.mrb[0].mxu0 %v347
    %v565 = vpop.f32.mrb[0].mxu0
    %v566 = vadd.f32 0.0, %v565
    %v567 = vpop.f32.mrb[0].mxu0
    %v568 = vpop.f32.mrb[0].mxu0
    %v569 = vadd.f32 0.0, %v568
    %v570 = vpop.f32.mrb[0].mxu0
    %571 = vmatprep.mubr.bf16.mxu0 %v350
    %572 = vmatmul.mubr.bf16.gmra.mrb[0].mxu0 %v349
    %v573 = vpop.f32.mrb[0].mxu0
    %v574 = vadd.f32 0.0, %v573
    %v575 = vpop.f32.mrb[0].mxu0
    %v576 = vpop.f32.mrb[0].mxu0
    %v577 = vadd.f32 0.0, %v576
    %v578 = vpop.f32.mrb[0].mxu0
    %579 = vmatprep.mubr.bf16.mxu0 %v352
    %580 = vmatmul.mubr.bf16.gmra.mrb[0].mxu0 %v351
    %v581 = vpop.f32.mrb[0].mxu0
    %v582 = vadd.f32 0.0, %v581
    %v583 = vpop.f32.mrb[0].mxu0
    %v584 = vpop.f32.mrb[0].mxu0
    %v585 = vadd.f32 0.0, %v584
    %v586 = vpop.f32.mrb[0].mxu0
    %587 = vmatprep.mubr.bf16.mxu0 %v354
    %588 = vmatmul.mubr.bf16.gmra.mrb[0].mxu0 %v353
    %v589 = vpop.f32.mrb[0].mxu0
    %v590 = vadd.f32 0.0, %v589
    %v591 = vpop.f32.mrb[0].mxu0
    %v592 = vpop.f32.mrb[0].mxu0
    %v593 = vadd.f32 0.0, %v592
    %v594 = vpop.f32.mrb[0].mxu0
    %595 = vmatprep.mubr.bf16.mxu0 %v356
    %596 = vmatmul.mubr.bf16.gmra.mrb[0].mxu0 %v355
    %v597 = vpop.f32.mrb[0].mxu0
    %v598 = vadd.f32 0.0, %v597
    %v599 = vpop.f32.mrb[0].mxu0
    %v600 = vpop.f32.mrb[0].mxu0
    %v601 = vadd.f32 0.0, %v600
    %v602 = vpop.f32.mrb[0].mxu0
    %603 = vmatprep.mubr.bf16.mxu0 %v358
    %604 = vmatmul.mubr.bf16.gmra.mrb[0].mxu0 %v357
    %v605 = vpop.f32.mrb[0].mxu0
    %v606 = vadd.f32 0.0, %v605
    %v607 = vpop.f32.mrb[0].mxu0
    %v608 = vpop.f32.mrb[0].mxu0
    %v609 = vadd.f32 0.0, %v608
    %v610 = vpop.f32.mrb[0].mxu0
    %611 = vmatprep.mubr.bf16.mxu0 %v360
    %612 = vmatmul.mubr.bf16.gmra.mrb[0].mxu0 %v359
    %v613 = vpop.f32.mrb[0].mxu0
    %v614 = vadd.f32 0.0, %v613
    %v615 = vpop.f32.mrb[0].mxu0
    %v616 = vpop.f32.mrb[0].mxu0
    %v617 = vadd.f32 0.0, %v616
    %v618 = vpop.f32.mrb[0].mxu0
    %619 = vmatprep.mubr.bf16.mxu0 %v362
    %620 = vmatmul.mubr.bf16.gmra.mrb[0].mxu0 %v361
    %v621 = vpop.f32.mrb[0].mxu0
    %v622 = vadd.f32 0.0, %v621
    %v623 = vpop.f32.mrb[0].mxu0
    %v624 = vpop.f32.mrb[0].mxu0
    %v625 = vadd.f32 0.0, %v624
    %v626 = vpop.f32.mrb[0].mxu0
    %627 = vmatprep.mubr.bf16.mxu0 %v364
    %628 = vmatmul.mubr.bf16.gmra.mrb[0].mxu0 %v363
    %v629 = vpop.f32.mrb[0].mxu0
    %v630 = vadd.f32 0.0, %v629
    %v631 = vpop.f32.mrb[0].mxu0
    %v632 = vpop.f32.mrb[0].mxu0
    %v633 = vadd.f32 0.0, %v632
    %v634 = vpop.f32.mrb[0].mxu0
    %635 = vmatprep.mubr.bf16.mxu0 %v366
    %636 = vmatmul.mubr.bf16.gmra.mrb[0].mxu0 %v365
    %v637 = vpop.f32.mrb[0].mxu0
    %v638 = vadd.f32 0.0, %v637
    %v639 = vpop.f32.mrb[0].mxu0
    %v640 = vpop.f32.mrb[0].mxu0
    %v641 = vadd.f32 0.0, %v640
    %v642 = vpop.f32.mrb[0].mxu0
    %643 = vmatprep.mubr.bf16.mxu0 %v368
    %644 = vmatmul.mubr.bf16.gmra.mrb[0].mxu0 %v367
    %v645 = vpop.f32.mrb[0].mxu0
    %v646 = vadd.f32 0.0, %v645
    %v647 = vpop.f32.mrb[0].mxu0
    %v648 = vpop.f32.mrb[0].mxu0
    %v649 = vadd.f32 0.0, %v648
    %v650 = vpop.f32.mrb[0].mxu0
    %651 = vmatprep.mubr.bf16.mxu0 %v370
    %652 = vmatmul.mubr.bf16.gmra.mrb[0].mxu0 %v369
    %v653 = vpop.f32.mrb[0].mxu0
    %v654 = vadd.f32 0.0, %v653
    %v655 = vpop.f32.mrb[0].mxu0
    %v656 = vpop.f32.mrb[0].mxu0
    %v657 = vadd.f32 0.0, %v656
    %v658 = vpop.f32.mrb[0].mxu0
    %659 = vmatprep.mubr.bf16.mxu0 %v372
    %660 = vmatmul.mubr.bf16.gmra.mrb[0].mxu0 %v371
    %v661 = vpop.f32.mrb[0].mxu0
    %v662 = vadd.f32 0.0, %v661
    %v663 = vpop.f32.mrb[0].mxu0
    %v664 = vpop.f32.mrb[0].mxu0
    %v665 = vadd.f32 0.0, %v664
    %v666 = vpop.f32.mrb[0].mxu0
    %667 = vmatprep.mubr.bf16.mxu0 %v374
    %668 = vmatmul.mubr.bf16.gmra.mrb[0].mxu0 %v373
    %v669 = vpop.f32.mrb[0].mxu0
    %v670 = vadd.f32 0.0, %v669
    %v671 = vpop.f32.mrb[0].mxu0
    %v672 = vpop.f32.mrb[0].mxu0
    %v673 = vadd.f32 0.0, %v672
    %v674 = vpop.f32.mrb[0].mxu0
    %675 = vmatprep.mubr.bf16.mxu0 %v376
    %676 = vmatmul.mubr.bf16.gmra.mrb[0].mxu0 %v375
    %v677 = vpop.f32.mrb[0].mxu0
    %v678 = vadd.f32 0.0, %v677
    %v679 = vpop.f32.mrb[0].mxu0
    %v680 = vpop.f32.mrb[0].mxu0
    %v681 = vadd.f32 0.0, %v680
    %v682 = vpop.f32.mrb[0].mxu0
    %683 = vmatprep.mubr.bf16.mxu0 %v378
    %684 = vmatmul.mubr.bf16.gmra.mrb[0].mxu0 %v377
    %v685 = vpop.f32.mrb[0].mxu0
    %v686 = vadd.f32 0.0, %v685
    %v687 = vpop.f32.mrb[0].mxu0
    %v688 = vpop.f32.mrb[0].mxu0
    %v689 = vadd.f32 0.0, %v688
    %v690 = vpop.f32.mrb[0].mxu0
    %691 = vmatprep.mubr.bf16.mxu0 %v380
    %692 = vmatmul.mubr.bf16.gmra.mrb[0].mxu0 %v379
    %v693 = vpop.f32.mrb[0].mxu0
    %v694 = vadd.f32 0.0, %v693
    %v695 = vpop.f32.mrb[0].mxu0
    %v696 = vpop.f32.mrb[0].mxu0
    %v697 = vadd.f32 0.0, %v696
    %v698 = vpop.f32.mrb[0].mxu0
    %699 = vmatprep.mubr.bf16.mxu0 %v382
    %700 = vmatmul.mubr.bf16.gmra.mrb[0].mxu0 %v381
    %v701 = vpop.f32.mrb[0].mxu0
    %v702 = vadd.f32 0.0, %v701
    %v703 = vpop.f32.mrb[0].mxu0
    %v704 = vpop.f32.mrb[0].mxu0
    %v705 = vadd.f32 0.0, %v704
    %v706 = vpop.f32.mrb[0].mxu0
    %707 = vmatprep.mubr.bf16.mxu0 %v384
    %708 = vmatmul.mubr.bf16.gmra.mrb[0].mxu0 %v383
    %v709 = vpop.f32.mrb[0].mxu0
    %v710 = vadd.f32 0.0, %v709
    %v711 = vpop.f32.mrb[0].mxu0
    %v712 = vpop.f32.mrb[0].mxu0
    %v713 = vadd.f32 0.0, %v712
    %v714 = vpop.f32.mrb[0].mxu0
    %715 = vmatprep.mubr.bf16.mxu0 %v386
    %716 = vmatmul.mubr.bf16.gmra.mrb[0].mxu0 %v385
    %v717 = vpop.f32.mrb[0].mxu0
    %v718 = vadd.f32 0.0, %v717
    %v719 = vpop.f32.mrb[0].mxu0
    %v720 = vpop.f32.mrb[0].mxu0
    %v721 = vadd.f32 0.0, %v720
    %v722 = vpop.f32.mrb[0].mxu0
    %723 = vmatprep.mubr.bf16.mxu0 %v388
    %724 = vmatmul.mubr.bf16.gmra.mrb[0].mxu0 %v387
    %v725 = vpop.f32.mrb[0].mxu0
    %v726 = vadd.f32 0.0, %v725
    %v727 = vpop.f32.mrb[0].mxu0
    %v728 = vpop.f32.mrb[0].mxu0
    %v729 = vadd.f32 0.0, %v728
    %v730 = vpop.f32.mrb[0].mxu0
    %731 = vmatprep.mubr.bf16.mxu0 %v390
    %732 = vmatmul.mubr.bf16.gmra.mrb[0].mxu0 %v389
    %v733 = vpop.f32.mrb[0].mxu0
    %v734 = vadd.f32 0.0, %v733
    %v735 = vpop.f32.mrb[0].mxu0
    %v736 = vpop.f32.mrb[0].mxu0
    %v737 = vadd.f32 0.0, %v736
    %v738 = vpop.f32.mrb[0].mxu0
    %739 = vdwg.mxu0
    %v740 = vadd.f32 %v95, %v566
    %v741 = vadd.f32 %v96, %v569
    %v742 = vadd.f32 %v97, %v574
    %v743 = vadd.f32 %v98, %v577
    %v744 = vadd.f32 %v99, %v582
    %v745 = vadd.f32 %v100, %v585
    %v746 = vadd.f32 %v101, %v590
    %v747 = vadd.f32 %v102, %v593
    %v748 = vadd.f32 %v103, %v598
    %v749 = vadd.f32 %v104, %v601
    %v750 = vadd.f32 %v105, %v606
    %v751 = vadd.f32 %v106, %v609
    %v752 = vadd.f32 %v107, %v614
    %v753 = vadd.f32 %v108, %v617
    %v754 = vadd.f32 %v109, %v622
    %v755 = vadd.f32 %v110, %v625
    %v756 = vadd.f32 %v111, %v630
    %v757 = vadd.f32 %v112, %v633
    %v758 = vadd.f32 %v113, %v638
    %v759 = vadd.f32 %v114, %v641
    %v760 = vadd.f32 %v115, %v646
    %v761 = vadd.f32 %v116, %v649
    %v762 = vadd.f32 %v117, %v654
    %v763 = vadd.f32 %v118, %v657
    %v764 = vadd.f32 %v119, %v662
    %v765 = vadd.f32 %v120, %v665
    %v766 = vadd.f32 %v121, %v670
    %v767 = vadd.f32 %v122, %v673
    %v768 = vadd.f32 %v123, %v678
    %v769 = vadd.f32 %v124, %v681
    %v770 = vadd.f32 %v125, %v686
    %v771 = vadd.f32 %v126, %v689
    %v772 = vadd.f32 %v127, %v694
    %v773 = vadd.f32 %v128, %v697
    %v774 = vadd.f32 %v129, %v702
    %v775 = vadd.f32 %v130, %v705
    %v776 = vadd.f32 %v131, %v710
    %v777 = vadd.f32 %v132, %v713
    %v778 = vadd.f32 %v133, %v718
    %v779 = vadd.f32 %v134, %v721
    %v780 = vadd.f32 %v135, %v726
    %v781 = vadd.f32 %v136, %v729
    %v782 = vadd.f32 %v137, %v734
    %v783 = vadd.f32 %v138, %v737
    %784 = vst [vmem:[#allocation2] sm:$0xff] %v740
    %785 = vst [vmem:[#allocation2 + $0x8] sm:$0xff] %v741
    %786 = vst [vmem:[#allocation2 + $0x10] sm:$0xff] %v742
    %787 = vst [vmem:[#allocation2 + $0x18] sm:$0xff] %v743
    %788 = vst [vmem:[#allocation2 + $0x20] sm:$0xff] %v744
    %789 = vst [vmem:[#allocation2 + $0x28] sm:$0xff] %v745
    %790 = vst [vmem:[#allocation2 + $0x30] sm:$0xff] %v746
    %791 = vst [vmem:[#allocation2 + $0x38] sm:$0xff] %v747
    %792 = vst [vmem:[#allocation2 + $0x40] sm:$0xff] %v748
    %793 = vst [vmem:[#allocation2 + $0x48] sm:$0xff] %v749
    %794 = vst [vmem:[#allocation2 + $0x50] sm:$0xff] %v750
    %795 = vst [vmem:[#allocation2 + $0x58] sm:$0xff] %v751
    %796 = vst [vmem:[#allocation2 + $0x60] sm:$0xff] %v752
    %797 = vst [vmem:[#allocation2 + $0x68] sm:$0xff] %v753
    %798 = vst [vmem:[#allocation2 + $0x70] sm:$0xff] %v754
    %799 = vst [vmem:[#allocation2 + $0x78] sm:$0xff] %v755
    %800 = vst [vmem:[#allocation2 + $0x80] sm:$0xff] %v756
    %801 = vst [vmem:[#allocation2 + $0x88] sm:$0xff] %v757
    %802 = vst [vmem:[#allocation2 + $0x90] sm:$0xff] %v758
    %803 = vst [vmem:[#allocation2 + $0x98] sm:$0xff] %v759
    %804 = vst [vmem:[#allocation2 + $0xa0] sm:$0xff] %v760
    %805 = vst [vmem:[#allocation2 + $0xa8] sm:$0xff] %v761
    %806 = vst [vmem:[#allocation2 + $0xb0] sm:$0xff] %v762
    %807 = vst [vmem:[#allocation2 + $0xb8] sm:$0xff] %v763
    %808 = vst [vmem:[#allocation2 + $0xc0] sm:$0xff] %v764
    %809 = vst [vmem:[#allocation2 + $0xc8] sm:$0xff] %v765
    %810 = vst [vmem:[#allocation2 + $0xd0] sm:$0xff] %v766
    %811 = vst [vmem:[#allocation2 + $0xd8] sm:$0xff] %v767
    %812 = vst [vmem:[#allocation2 + $0xe0] sm:$0xff] %v768
    %813 = vst [vmem:[#allocation2 + $0xe8] sm:$0xff] %v769
    %814 = vst [vmem:[#allocation2 + $0xf0] sm:$0xff] %v770
    %815 = vst [vmem:[#allocation2 + $0xf8] sm:$0xff] %v771
    %816 = vst [vmem:[#allocation2 + $0x100] sm:$0xff] %v772
    %817 = vst [vmem:[#allocation2 + $0x108] sm:$0xff] %v773
    %818 = vst [vmem:[#allocation2 + $0x110] sm:$0xff] %v774
    %819 = vst [vmem:[#allocation2 + $0x118] sm:$0xff] %v775
    %820 = vst [vmem:[#allocation2 + $0x120] sm:$0xff] %v776
    %821 = vst [vmem:[#allocation2 + $0x128] sm:$0xff] %v777
    %822 = vst [vmem:[#allocation2 + $0x130] sm:$0xff] %v778
    %823 = vst [vmem:[#allocation2 + $0x138] sm:$0xff] %v779
    %824 = vst [vmem:[#allocation2 + $0x140] sm:$0xff] %v780
    %825 = vst [vmem:[#allocation2 + $0x148] sm:$0xff] %v781
    %826 = vst [vmem:[#allocation2 + $0x150] sm:$0xff] %v782
    %827 = vst [vmem:[#allocation2 + $0x158] sm:$0xff] %v783
    // Predicated region
    $region30: #{tpu_custom_call.1} parent=1 // pred_check
      %p828 = pneg %p47
    $region31: #{tpu_custom_call.1} parent=1 // pred_check_branch
      %830 = sbr.rel (%p828) target = $region33
    $region32: #{tpu_custom_call.1} parent=1 // pred_region
      %v831 = vld [vmem:[#allocation2] sm:$0xff]
      %v832 = vld [vmem:[#allocation2 + $0x8] sm:$0xff]
      %v833 = vld [vmem:[#allocation2 + $0x10] sm:$0xff]
      %v834 = vld [vmem:[#allocation2 + $0x18] sm:$0xff]
      %v835 = vld [vmem:[#allocation2 + $0x20] sm:$0xff]
      %v836 = vld [vmem:[#allocation2 + $0x28] sm:$0xff]
      %v837 = vld [vmem:[#allocation2 + $0x30] sm:$0xff]
      %v838 = vld [vmem:[#allocation2 + $0x38] sm:$0xff]
      %v839 = vld [vmem:[#allocation2 + $0x40] sm:$0xff]
      %v840 = vld [vmem:[#allocation2 + $0x48] sm:$0xff]
      %v841 = vld [vmem:[#allocation2 + $0x50] sm:$0xff]
      %v842 = vld [vmem:[#allocation2 + $0x58] sm:$0xff]
      %v843 = vld [vmem:[#allocation2 + $0x60] sm:$0xff]
      %v844 = vld [vmem:[#allocation2 + $0x68] sm:$0xff]
      %v845 = vld [vmem:[#allocation2 + $0x70] sm:$0xff]
      %v846 = vld [vmem:[#allocation2 + $0x78] sm:$0xff]
      %v847 = vld [vmem:[#allocation2 + $0x80] sm:$0xff]
      %v848 = vld [vmem:[#allocation2 + $0x88] sm:$0xff]
      %v849 = vld [vmem:[#allocation2 + $0x90] sm:$0xff]
      %v850 = vld [vmem:[#allocation2 + $0x98] sm:$0xff]
      %v851 = vld [vmem:[#allocation2 + $0xa0] sm:$0xff]
      %v852 = vld [vmem:[#allocation2 + $0xa8] sm:$0xff]
      %v853 = vld [vmem:[#allocation2 + $0xb0] sm:$0xff]
      %v854 = vld [vmem:[#allocation2 + $0xb8] sm:$0xff]
      %v855 = vld [vmem:[#allocation2 + $0xc0] sm:$0xff]
      %v856 = vld [vmem:[#allocation2 + $0xc8] sm:$0xff]
      %v857 = vld [vmem:[#allocation2 + $0xd0] sm:$0xff]
      %v858 = vld [vmem:[#allocation2 + $0xd8] sm:$0xff]
      %v859 = vld [vmem:[#allocation2 + $0xe0] sm:$0xff]
      %v860 = vld [vmem:[#allocation2 + $0xe8] sm:$0xff]
      %v861 = vld [vmem:[#allocation2 + $0xf0] sm:$0xff]
      %v862 = vld [vmem:[#allocation2 + $0xf8] sm:$0xff]
      %v863 = vld [vmem:[#allocation2 + $0x100] sm:$0xff]
      %v864 = vld [vmem:[#allocation2 + $0x108] sm:$0xff]
      %v865 = vld [vmem:[#allocation2 + $0x110] sm:$0xff]
      %v866 = vld [vmem:[#allocation2 + $0x118] sm:$0xff]
      %v867 = vld [vmem:[#allocation2 + $0x120] sm:$0xff]
      %v868 = vld [vmem:[#allocation2 + $0x128] sm:$0xff]
      %v869 = vld [vmem:[#allocation2 + $0x130] sm:$0xff]
      %v870 = vld [vmem:[#allocation2 + $0x138] sm:$0xff]
      %v871 = vld [vmem:[#allocation2 + $0x140] sm:$0xff]
      %v872 = vld [vmem:[#allocation2 + $0x148] sm:$0xff]
      %v873 = vld [vmem:[#allocation2 + $0x150] sm:$0xff]
      %v874 = vld [vmem:[#allocation2 + $0x158] sm:$0xff]
      %v875 = vld [vmem:[%s2] sm:$0x1]
      %v877 = vlaneseq
      %v878 = vshrl.u32 %v877, 7
      %v879 = vsub.s32 0, %v878
      %v880 = vrot.slane %v875, %v879
      %v882 = vmul.f32 %v831, %v880
      %v883 = vmul.f32 %v832, %v880
      %v884 = vmul.f32 %v833, %v880
      %v885 = vmul.f32 %v834, %v880
      %v886 = vmul.f32 %v835, %v880
      %v887 = vmul.f32 %v836, %v880
      %v888 = vmul.f32 %v837, %v880
      %v889 = vmul.f32 %v838, %v880
      %v890 = vmul.f32 %v839, %v880
      %v891 = vmul.f32 %v840, %v880
      %v892 = vmul.f32 %v841, %v880
      %v893 = vmul.f32 %v842, %v880
      %v894 = vmul.f32 %v843, %v880
      %v895 = vmul.f32 %v844, %v880
      %v896 = vmul.f32 %v845, %v880
      %v897 = vmul.f32 %v846, %v880
      %v898 = vmul.f32 %v847, %v880
      %v899 = vmul.f32 %v848, %v880
      %v900 = vmul.f32 %v849, %v880
      %v901 = vmul.f32 %v850, %v880
      %v902 = vmul.f32 %v851, %v880
      %v903 = vmul.f32 %v852, %v880
      %v904 = vmul.f32 %v853, %v880
      %v905 = vmul.f32 %v854, %v880
      %v906 = vmul.f32 %v855, %v880
      %v907 = vmul.f32 %v856, %v880
      %v908 = vmul.f32 %v857, %v880
      %v909 = vmul.f32 %v858, %v880
      %v910 = vmul.f32 %v859, %v880
      %v911 = vmul.f32 %v860, %v880
      %v912 = vmul.f32 %v861, %v880
      %v913 = vmul.f32 %v862, %v880
      %v914 = vmul.f32 %v863, %v880
      %v915 = vmul.f32 %v864, %v880
      %v916 = vmul.f32 %v865, %v880
      %v917 = vmul.f32 %v866, %v880
      %v918 = vmul.f32 %v867, %v880
      %v919 = vmul.f32 %v868, %v880
      %v920 = vmul.f32 %v869, %v880
      %v921 = vmul.f32 %v870, %v880
      %v922 = vmul.f32 %v871, %v880
      %v923 = vmul.f32 %v872, %v880
      %v924 = vmul.f32 %v873, %v880
      %v925 = vmul.f32 %v874, %v880
      %v926 = vld [vmem:[%s3] sm:$0x1]
      %v928 = vlaneseq
      %v929 = vshrl.u32 %v928, 7
      %v930 = vsub.s32 0, %v929
      %v931 = vrot.slane %v926, %v930
      %v933 = vadd.f32 %v882, %v931
      %v934 = vadd.f32 %v883, %v931
      %v935 = vadd.f32 %v884, %v931
      %v936 = vadd.f32 %v885, %v931
      %v937 = vadd.f32 %v886, %v931
      %v938 = vadd.f32 %v887, %v931
      %v939 = vadd.f32 %v888, %v931
      %v940 = vadd.f32 %v889, %v931
      %v941 = vadd.f32 %v890, %v931
      %v942 = vadd.f32 %v891, %v931
      %v943 = vadd.f32 %v892, %v931
      %v944 = vadd.f32 %v893, %v931
      %v945 = vadd.f32 %v894, %v931
      %v946 = vadd.f32 %v895, %v931
      %v947 = vadd.f32 %v896, %v931
      %v948 = vadd.f32 %v897, %v931
      %v949 = vadd.f32 %v898, %v931
      %v950 = vadd.f32 %v899, %v931
      %v951 = vadd.f32 %v900, %v931
      %v952 = vadd.f32 %v901, %v931
      %v953 = vadd.f32 %v902, %v931
      %v954 = vadd.f32 %v903, %v931
      %v955 = vadd.f32 %v904, %v931
      %v956 = vadd.f32 %v905, %v931
      %v957 = vadd.f32 %v906, %v931
      %v958 = vadd.f32 %v907, %v931
      %v959 = vadd.f32 %v908, %v931
      %v960 = vadd.f32 %v909, %v931
      %v961 = vadd.f32 %v910, %v931
      %v962 = vadd.f32 %v911, %v931
      %v963 = vadd.f32 %v912, %v931
      %v964 = vadd.f32 %v913, %v931
      %v965 = vadd.f32 %v914, %v931
      %v966 = vadd.f32 %v915, %v931
      %v967 = vadd.f32 %v916, %v931
      %v968 = vadd.f32 %v917, %v931
      %v969 = vadd.f32 %v918, %v931
      %v970 = vadd.f32 %v919, %v931
      %v971 = vadd.f32 %v920, %v931
      %v972 = vadd.f32 %v921, %v931
      %v973 = vadd.f32 %v922, %v931
      %v974 = vadd.f32 %v923, %v931
      %v975 = vadd.f32 %v924, %v931
      %v976 = vadd.f32 %v925, %v931
      %v977 = vmax.f32 %v933, 0.0
      %v978 = vmax.f32 %v934, 0.0
      %v979 = vmax.f32 %v935, 0.0
      %v980 = vmax.f32 %v936, 0.0
      %v981 = vmax.f32 %v937, 0.0
      %v982 = vmax.f32 %v938, 0.0
      %v983 = vmax.f32 %v939, 0.0
      %v984 = vmax.f32 %v940, 0.0
      %v985 = vmax.f32 %v941, 0.0
      %v986 = vmax.f32 %v942, 0.0
      %v987 = vmax.f32 %v943, 0.0
      %v988 = vmax.f32 %v944, 0.0
      %v989 = vmax.f32 %v945, 0.0
      %v990 = vmax.f32 %v946, 0.0
      %v991 = vmax.f32 %v947, 0.0
      %v992 = vmax.f32 %v948, 0.0
      %v993 = vmax.f32 %v949, 0.0
      %v994 = vmax.f32 %v950, 0.0
      %v995 = vmax.f32 %v951, 0.0
      %v996 = vmax.f32 %v952, 0.0
      %v997 = vmax.f32 %v953, 0.0
      %v998 = vmax.f32 %v954, 0.0
      %v999 = vmax.f32 %v955, 0.0
      %v1000 = vmax.f32 %v956, 0.0
      %v1001 = vmax.f32 %v957, 0.0
      %v1002 = vmax.f32 %v958, 0.0
      %v1003 = vmax.f32 %v959, 0.0
      %v1004 = vmax.f32 %v960, 0.0
      %v1005 = vmax.f32 %v961, 0.0
      %v1006 = vmax.f32 %v962, 0.0
      %v1007 = vmax.f32 %v963, 0.0
      %v1008 = vmax.f32 %v964, 0.0
      %v1009 = vmax.f32 %v965, 0.0
      %v1010 = vmax.f32 %v966, 0.0
      %v1011 = vmax.f32 %v967, 0.0
      %v1012 = vmax.f32 %v968, 0.0
      %v1013 = vmax.f32 %v969, 0.0
      %v1014 = vmax.f32 %v970, 0.0
      %v1015 = vmax.f32 %v971, 0.0
      %v1016 = vmax.f32 %v972, 0.0
      %v1017 = vmax.f32 %v973, 0.0
      %v1018 = vmax.f32 %v974, 0.0
      %v1019 = vmax.f32 %v975, 0.0
      %v1020 = vmax.f32 %v976, 0.0
      %v1021 = vpack.c.bf16 %v978, %v977
      %v1022 = vpack.c.bf16 %v980, %v979
      %v1023 = vpack.c.bf16 %v982, %v981
      %v1024 = vpack.c.bf16 %v984, %v983
      %v1025 = vpack.c.bf16 %v986, %v985
      %v1026 = vpack.c.bf16 %v988, %v987
      %v1027 = vpack.c.bf16 %v990, %v989
      %v1028 = vpack.c.bf16 %v992, %v991
      %v1029 = vpack.c.bf16 %v994, %v993
      %v1030 = vpack.c.bf16 %v996, %v995
      %v1031 = vpack.c.bf16 %v998, %v997
      %v1032 = vpack.c.bf16 %v1000, %v999
      %v1033 = vpack.c.bf16 %v1002, %v1001
      %v1034 = vpack.c.bf16 %v1004, %v1003
      %v1035 = vpack.c.bf16 %v1006, %v1005
      %v1036 = vpack.c.bf16 %v1008, %v1007
      %v1037 = vpack.c.bf16 %v1010, %v1009
      %v1038 = vpack.c.bf16 %v1012, %v1011
      %v1039 = vpack.c.bf16 %v1014, %v1013
      %v1040 = vpack.c.bf16 %v1016, %v1015
      %v1041 = vpack.c.bf16 %v1018, %v1017
      %v1042 = vpack.c.bf16 %v1020, %v1019
      %v1065 = vunpack.c.l.b16 %v1021
      %v1066 = vunpack.c.h.b16 %v1021
      %v1067 = vunpack.c.l.b16 %v1022
      %v1068 = vunpack.c.h.b16 %v1022
      %v1069 = vunpack.c.l.b16 %v1023
      %v1070 = vunpack.c.h.b16 %v1023
      %v1071 = vunpack.c.l.b16 %v1024
      %v1072 = vunpack.c.h.b16 %v1024
      %v1073 = vunpack.c.l.b16 %v1025
      %v1074 = vunpack.c.h.b16 %v1025
      %v1075 = vunpack.c.l.b16 %v1026
      %v1076 = vunpack.c.h.b16 %v1026
      %v1077 = vunpack.c.l.b16 %v1027
      %v1078 = vunpack.c.h.b16 %v1027
      %v1079 = vunpack.c.l.b16 %v1028
      %v1080 = vunpack.c.h.b16 %v1028
      %v1081 = vunpack.c.l.b16 %v1029
      %v1082 = vunpack.c.h.b16 %v1029
      %v1083 = vunpack.c.l.b16 %v1030
      %v1084 = vunpack.c.h.b16 %v1030
      %v1085 = vunpack.c.l.b16 %v1031
      %v1086 = vunpack.c.h.b16 %v1031
      %v1087 = vunpack.c.l.b16 %v1032
      %v1088 = vunpack.c.h.b16 %v1032
      %v1089 = vunpack.c.l.b16 %v1033
      %v1090 = vunpack.c.h.b16 %v1033
      %v1091 = vunpack.c.l.b16 %v1034
      %v1092 = vunpack.c.h.b16 %v1034
      %v1093 = vunpack.c.l.b16 %v1035
      %v1094 = vunpack.c.h.b16 %v1035
      %v1095 = vunpack.c.l.b16 %v1036
      %v1096 = vunpack.c.h.b16 %v1036
      %v1097 = vunpack.c.l.b16 %v1037
      %v1098 = vunpack.c.h.b16 %v1037
      %v1099 = vunpack.c.l.b16 %v1038
      %v1100 = vunpack.c.h.b16 %v1038
      %v1101 = vunpack.c.l.b16 %v1039
      %v1102 = vunpack.c.h.b16 %v1039
      %v1103 = vunpack.c.l.b16 %v1040
      %v1104 = vunpack.c.h.b16 %v1040
      %v1105 = vunpack.c.l.b16 %v1041
      %v1106 = vunpack.c.h.b16 %v1041
      %v1107 = vunpack.c.l.b16 %v1042
      %v1108 = vunpack.c.h.b16 %v1042
      %v1109 = vpack.c.b16 %v1065, %v1065
      %v1110 = vpack.c.b16 %v1066, %v1066
      %v1111 = vpack.c.b16 %v1067, %v1067
      %v1112 = vpack.c.b16 %v1068, %v1068
      %v1113 = vpack.c.b16 %v1069, %v1069
      %v1114 = vpack.c.b16 %v1070, %v1070
      %v1115 = vpack.c.b16 %v1071, %v1071
      %v1116 = vpack.c.b16 %v1072, %v1072
      %v1117 = vpack.c.b16 %v1073, %v1073
      %v1118 = vpack.c.b16 %v1074, %v1074
      %v1119 = vpack.c.b16 %v1075, %v1075
      %v1120 = vpack.c.b16 %v1076, %v1076
      %v1121 = vpack.c.b16 %v1077, %v1077
      %v1122 = vpack.c.b16 %v1078, %v1078
      %v1123 = vpack.c.b16 %v1079, %v1079
      %v1124 = vpack.c.b16 %v1080, %v1080
      %v1125 = vpack.c.b16 %v1081, %v1081
      %v1126 = vpack.c.b16 %v1082, %v1082
      %v1127 = vpack.c.b16 %v1083, %v1083
      %v1128 = vpack.c.b16 %v1084, %v1084
      %v1129 = vpack.c.b16 %v1085, %v1085
      %v1130 = vpack.c.b16 %v1086, %v1086
      %v1131 = vpack.c.b16 %v1087, %v1087
      %v1132 = vpack.c.b16 %v1088, %v1088
      %v1133 = vpack.c.b16 %v1089, %v1089
      %v1134 = vpack.c.b16 %v1090, %v1090
      %v1135 = vpack.c.b16 %v1091, %v1091
      %v1136 = vpack.c.b16 %v1092, %v1092
      %v1137 = vpack.c.b16 %v1093, %v1093
      %v1138 = vpack.c.b16 %v1094, %v1094
      %v1139 = vpack.c.b16 %v1095, %v1095
      %v1140 = vpack.c.b16 %v1096, %v1096
      %v1141 = vpack.c.b16 %v1097, %v1097
      %v1142 = vpack.c.b16 %v1098, %v1098
      %v1143 = vpack.c.b16 %v1099, %v1099
      %v1144 = vpack.c.b16 %v1100, %v1100
      %v1145 = vpack.c.b16 %v1101, %v1101
      %v1146 = vpack.c.b16 %v1102, %v1102
      %v1147 = vpack.c.b16 %v1103, %v1103
      %v1148 = vpack.c.b16 %v1104, %v1104
      %v1149 = vpack.c.b16 %v1105, %v1105
      %v1150 = vpack.c.b16 %v1106, %v1106
      %v1151 = vpack.c.b16 %v1107, %v1107
      %v1152 = vpack.c.b16 %v1108, %v1108
      %1197 = vst [vmem:[#allocation8] sm:$0xf] %v1109
      %1198 = vst [vmem:[#allocation8 + $0x4] sm:$0xf] %v1110
      %1199 = vst [vmem:[#allocation8 + $0x8] sm:$0xf] %v1111
      %1200 = vst [vmem:[#allocation8 + $0xc] sm:$0xf] %v1112
      %1201 = vst [vmem:[#allocation8 + $0x10] sm:$0xf] %v1113
      %1202 = vst [vmem:[#allocation8 + $0x14] sm:$0xf] %v1114
      %1203 = vst [vmem:[#allocation8 + $0x18] sm:$0xf] %v1115
      %1204 = vst [vmem:[#allocation8 + $0x1c] sm:$0xf] %v1116
      %1205 = vst [vmem:[#allocation8 + $0x20] sm:$0xf] %v1117
      %1206 = vst [vmem:[#allocation8 + $0x24] sm:$0xf] %v1118
      %1207 = vst [vmem:[#allocation8 + $0x28] sm:$0xf] %v1119
      %1208 = vst [vmem:[#allocation8 + $0x2c] sm:$0xf] %v1120
      %1209 = vst [vmem:[#allocation8 + $0x30] sm:$0xf] %v1121
      %1210 = vst [vmem:[#allocation8 + $0x34] sm:$0xf] %v1122
      %1211 = vst [vmem:[#allocation8 + $0x38] sm:$0xf] %v1123
      %1212 = vst [vmem:[#allocation8 + $0x3c] sm:$0xf] %v1124
      %1213 = vst [vmem:[#allocation8 + $0x40] sm:$0xf] %v1125
      %1214 = vst [vmem:[#allocation8 + $0x44] sm:$0xf] %v1126
      %1215 = vst [vmem:[#allocation8 + $0x48] sm:$0xf] %v1127
      %1216 = vst [vmem:[#allocation8 + $0x4c] sm:$0xf] %v1128
      %1217 = vst [vmem:[#allocation8 + $0x50] sm:$0xf] %v1129
      %1218 = vst [vmem:[#allocation8 + $0x54] sm:$0xf] %v1130
      %1219 = vst [vmem:[#allocation8 + $0x58] sm:$0xf] %v1131
      %1220 = vst [vmem:[#allocation8 + $0x5c] sm:$0xf] %v1132
      %1221 = vst [vmem:[#allocation8 + $0x60] sm:$0xf] %v1133
      %1222 = vst [vmem:[#allocation8 + $0x64] sm:$0xf] %v1134
      %1223 = vst [vmem:[#allocation8 + $0x68] sm:$0xf] %v1135
      %1224 = vst [vmem:[#allocation8 + $0x6c] sm:$0xf] %v1136
      %1225 = vst [vmem:[#allocation8 + $0x70] sm:$0xf] %v1137
      %1226 = vst [vmem:[#allocation8 + $0x74] sm:$0xf] %v1138
      %1227 = vst [vmem:[#allocation8 + $0x78] sm:$0xf] %v1139
      %1228 = vst [vmem:[#allocation8 + $0x7c] sm:$0xf] %v1140
      %1229 = vst [vmem:[#allocation8 + $0x80] sm:$0xf] %v1141
      %1230 = vst [vmem:[#allocation8 + $0x84] sm:$0xf] %v1142
      %1231 = vst [vmem:[#allocation8 + $0x88] sm:$0xf] %v1143
      %1232 = vst [vmem:[#allocation8 + $0x8c] sm:$0xf] %v1144
      %1233 = vst [vmem:[#allocation8 + $0x90] sm:$0xf] %v1145
      %1234 = vst [vmem:[#allocation8 + $0x94] sm:$0xf] %v1146
      %1235 = vst [vmem:[#allocation8 + $0x98] sm:$0xf] %v1147
      %1236 = vst [vmem:[#allocation8 + $0x9c] sm:$0xf] %v1148
      %1237 = vst [vmem:[#allocation8 + $0xa0] sm:$0xf] %v1149
      %1238 = vst [vmem:[#allocation8 + $0xa4] sm:$0xf] %v1150
      %1239 = vst [vmem:[#allocation8 + $0xa8] sm:$0xf] %v1151
      %1240 = vst [vmem:[#allocation8 + $0xac] sm:$0xf] %v1152
    $region33: #{tpu_custom_call.1} parent=1 // pred_fallthru
      _
    // Predicated region
    $region34: #{tpu_custom_call.1} parent=1 // pred_check
      _
    $region35: #{tpu_custom_call.1} parent=1 // pred_check_branch
      %1242 = sbr.rel (0) target = $region37
    $region36: #{tpu_custom_call.1} parent=1 // pred_region
      %s1244 = ssub.s32 2816, 2816
      %1245 = vsyncadd [#allocation5], %s1244
      %s1246 = sshll.u32 [#allocation8], 4
      %s1247 = int_to_ptr.vmem [resolvable:$true] %s1246
      %1252 = dma.vmem_to_hbm [thread:$0]  %s1247, 2816, %s4, [#allocation5], 64, 64, 4
    $region37: #{tpu_custom_call.1} parent=1 // pred_fallthru
      _
    // Predicated region
    $region38: #{tpu_custom_call.1} parent=1 // pred_check
      _
    $region39: #{tpu_custom_call.1} parent=1 // pred_check_branch
      %1254 = sbr.rel (0) target = $region41
    $region40: #{tpu_custom_call.1} parent=1 // pred_region
      %1255 = dma.done [#allocation5], 2816
    $region41: #{tpu_custom_call.1} parent=1 // pred_fallthru
      _
    %1256 = vsyncpa [#allocation4], 1
    %1257 = vsyncpa [#allocation7], 1
    %1258 = vsyncpa [#allocation5], 1

</llo_original>
